<compile_context>
chip_gen: v6e
topology: v6e:2x2x1
jax: 0.10.0
libtpu: 0.0.40
codegen_flags: <defaults>
</compile_context>

<pallas_src>
import math

import jax
import jax.numpy as jnp
from jax.experimental import pallas as pl
from jax.experimental.pallas import tpu as pltpu


# ---------------------------------------------------------------------------
# Kernel bodies (parameterized by in-kernel compute dtype for the MXU)
# ---------------------------------------------------------------------------
def _make_single_k_kernel(compute_dtype):
    """K fits in one tile: 2-D grid, no reduction axis, no accumulator."""
    def kernel(x_ref, w_ref, b_ref, o_ref):
        x = x_ref[...].astype(compute_dtype)
        w = w_ref[...].astype(compute_dtype)
        acc = jnp.dot(x, w, preferred_element_type=jnp.float32)
        o_ref[...] = (acc + b_ref[...]).astype(o_ref.dtype)
    return kernel


def _make_acc_in_out_kernel(compute_dtype):
    """3-D reduction grid, f32 output: accumulate directly into the resident
    output block (no scratch); bias folded into the k==0 init."""
    def kernel(x_ref, w_ref, b_ref, o_ref):
        k = pl.program_id(2)

        @pl.when(k == 0)
        def _():
            o_ref[...] = jnp.broadcast_to(b_ref[...], o_ref.shape)

        x = x_ref[...].astype(compute_dtype)
        w = w_ref[...].astype(compute_dtype)
        o_ref[...] += jnp.dot(x, w, preferred_element_type=jnp.float32)
    return kernel


def _make_acc_scratch_kernel(compute_dtype):
    """3-D reduction grid, narrow output dtype: f32 VMEM scratch accumulator,
    bias add + cast on the last K step."""
    def kernel(x_ref, w_ref, b_ref, o_ref, acc_ref):
        k = pl.program_id(2)

        @pl.when(k == 0)
        def _():
            acc_ref[...] = jnp.zeros_like(acc_ref)

        x = x_ref[...].astype(compute_dtype)
        w = w_ref[...].astype(compute_dtype)
        acc_ref[...] += jnp.dot(x, w, preferred_element_type=jnp.float32)

        @pl.when(k == pl.num_programs(2) - 1)
        def _():
            o_ref[...] = (acc_ref[...] + b_ref[...]).astype(o_ref.dtype)
    return kernel


# ---------------------------------------------------------------------------
# Hardware-aware tile policy
# ---------------------------------------------------------------------------
def _round_up(x, m):
    return ((x + m - 1) // m) * m


def _vmem_capacity_bytes():
    """Physical per-core VMEM; conservative 64 MiB (v7x-class) fallback."""
    try:
        info = pltpu.get_tpu_info()
        cap = getattr(info, "vmem_capacity_bytes", None)
        if cap:
            return int(cap)
    except Exception:
        pass
    return 64 << 20


def _default_caps(vmem_cap):
    """(tm_cap, tn_cap, tk_cap). Bigger tiles on 128-MiB-VMEM parts (v5e/v6e),
    moderate tiles on 64-MiB parts (v7x) to keep headroom under the limit."""
    if vmem_cap >= (96 << 20):        # v5e / v6e: 128 MiB physical VMEM
        return 512, 2048, 2048
    return 512, 1024, 1024            # v7x-class: 64 MiB physical VMEM


def _choose_tile(dim, cap, align):
    """Pick (tile, padded_dim). tile is an `align` multiple that divides
    padded_dim; padding is minimal (divisor policy, not round-to-cap)."""
    if dim <= cap:
        t = _round_up(dim, align)
        return t, t
    nblocks = -(-dim // cap)                       # ceil(dim / cap)
    t = _round_up(-(-dim // nblocks), align)       # balanced, aligned tile
    return t, t * nblocks


# ---------------------------------------------------------------------------
# Wrapper
# ---------------------------------------------------------------------------
def mlp_layer(x, weight, bias=None, *, tm=None, tn=None, tk=None,
              cast_operands_to_bf16=False):
    """output = x @ weight + bias, computed in a Pallas TPU kernel.

    - Generation-aware, VMEM-budgeted default tiles (bigger on v5e/v6e's
      128 MiB VMEM, conservative on v7x's 64 MiB).
    - Arbitrary (non-divisible) shapes handled by minimal zero-padding +
      slicing; padding along K contributes exactly 0 to the dot.
    - Optional bf16 operand path casts per-tile inside the kernel (single HBM
      pass); accumulation stays f32. NOTE: opt-in, changes numerics slightly.
    """
    M, K = x.shape
    K2, N = weight.shape
    assert K == K2, "in_features mismatch"
    out_dtype = x.dtype

    if bias is None:
        bias = jnp.zeros((N,), jnp.float32)

    vmem_cap = _vmem_capacity_bytes()
    tm_cap, tn_cap, tk_cap = _default_caps(vmem_cap)
    is_v7x_like = vmem_cap < (96 << 20)   # 2 TensorCores / small VMEM class

    if tm is None:
        tm, Mp = _choose_tile(M, tm_cap, 8)
    else:
        Mp = _round_up(M, tm)
    if tn is None:
        tn, Np = _choose_tile(N, tn_cap, 128)
    else:
        Np = _round_up(N, tn)
    if tk is None:
        tk, Kp = _choose_tile(K, tk_cap, 128)
    else:
        Kp = _round_up(K, tk)

    # v7x megacore: if both parallel axes collapsed to a single block on a
    # non-trivial problem, split one axis (prefer N) so both TCs get work.
    if is_v7x_like and (Mp // tm == 1) and (Np // tn == 1):
        if Np >= 512:
            tn = _round_up(-(-Np // 2), 128)
            Np = 2 * tn
        elif Mp >= 256:
            tm = _round_up(-(-Mp // 2), 8)
            Mp = 2 * tm

    # Minimal zero-padding; skipped entirely when already aligned.
    xp = x if (Mp == M and Kp == K) else jnp.pad(x, ((0, Mp - M), (0, Kp - K)))
    wp = weight if (Kp == K and Np == N) else jnp.pad(
        weight, ((0, Kp - K), (0, Np - N)))
    bp = bias.astype(jnp.float32).reshape(1, N)
    if Np != N:
        bp = jnp.pad(bp, ((0, 0), (0, Np - N)))

    # Operands stay in their HBM dtype; bf16 cast (if requested) happens
    # per-tile inside the kernel body, just before the MXU dot.
    compute_dtype = jnp.bfloat16 if cast_operands_to_bf16 else xp.dtype

    in_bytes = jnp.dtype(xp.dtype).itemsize
    out_bytes = jnp.dtype(out_dtype).itemsize
    grid_k = Kp // tk
    m_blocks, n_blocks = Mp // tm, Np // tn
    use_direct_acc = jnp.dtype(out_dtype) == jnp.dtype(jnp.float32)

    # Double-buffered operand/output tiles + bias strip (+ f32 scratch if used).
    x_tile_k = tk if grid_k > 1 else Kp
    footprint = (2 * (tm * x_tile_k + x_tile_k * tn) * in_bytes
                 + 2 * tm * tn * out_bytes
                 + 2 * tn * 4)
    if grid_k > 1 and not use_direct_acc:
        footprint += tm * tn * 4
    # Hardware-derived ceiling (~85% of physical VMEM), generous floor.
    vmem_ceiling = int(vmem_cap * 0.85)
    vmem_limit = int(min(vmem_ceiling, max(32 << 20, footprint * 2)))

    # Truthful traffic estimate: x re-streamed per N block, weight per M block.
    cost = pl.CostEstimate(
        flops=2 * Mp * Np * Kp,
        transcendentals=0,
        bytes_accessed=(in_bytes * Mp * Kp * n_blocks
                        + in_bytes * Kp * Np * m_blocks
                        + out_bytes * Mp * Np
                        + 4 * Np),
    )

    scratch = []
    if grid_k == 1:
        # Small-K fast path: 2-D grid, j outermost so the (K, tn) weight strip
        # stays VMEM-resident while the M tiles stream past it.
        grid = (n_blocks, m_blocks)
        in_specs = [
            pl.BlockSpec((tm, Kp), lambda j, i: (i, 0)),   # x row strip
            pl.BlockSpec((Kp, tn), lambda j, i: (0, j)),   # resident weight strip
            pl.BlockSpec((1, tn), lambda j, i: (0, j)),    # bias strip
        ]
        out_specs = pl.BlockSpec((tm, tn), lambda j, i: (i, j))
        dims = ("parallel", "parallel")
        kernel = _make_single_k_kernel(compute_dtype)
    else:
        grid = (m_blocks, n_blocks, grid_k)
        in_specs = [
            pl.BlockSpec((tm, tk), lambda i, j, k: (i, k)),
            pl.BlockSpec((tk, tn), lambda i, j, k: (k, j)),
            pl.BlockSpec((1, tn), lambda i, j, k: (0, j)),
        ]
        out_specs = pl.BlockSpec((tm, tn), lambda i, j, k: (i, j))
        dims = ("parallel", "parallel", "arbitrary")
        if use_direct_acc:
            kernel = _make_acc_in_out_kernel(compute_dtype)   # acc in o_ref
        else:
            kernel = _make_acc_scratch_kernel(compute_dtype)
            scratch = [pltpu.VMEM((tm, tn), jnp.float32)]

    out = pl.pallas_call(
        kernel,
        out_shape=jax.ShapeDtypeStruct((Mp, Np), out_dtype),
        grid_spec=pltpu.PrefetchScalarGridSpec(
            num_scalar_prefetch=0,
            grid=grid,
            in_specs=in_specs,
            out_specs=out_specs,
            scratch_shapes=scratch,
        ),
        compiler_params=pltpu.CompilerParams(
            dimension_semantics=dims,
            vmem_limit_bytes=vmem_limit,
        ),
        cost_estimate=cost,
    )(xp, wp, bp)

    if Mp != M or Np != N:
        out = out[:M, :N]
    return out


def init_mlp_params(key, in_features, out_features):
    """Mirrors MLPLayer.reset_parameters: normal(mean=-stdv, std=stdv),
    stdv = 1/sqrt(out_features)."""
    stdv = 1.0 / math.sqrt(out_features)
    kw, kb = jax.random.split(key)
    weight = (
        jax.random.normal(kw, (in_features, out_features), jnp.float32) * stdv - stdv
    )
    bias = jax.random.normal(kb, (out_features,), jnp.float32) * stdv - stdv
    return weight, bias


if __name__ == "__main__":
    key = jax.random.PRNGKey(0)
    k1, k2, k3, k4 = jax.random.split(key, 4)

    # Test 1: small MLP shapes -> single-K fast path (2-D grid, no reduction).
    batch, in_features, out_features = 8, 32, 32
    x = jax.random.normal(k1, (batch, in_features), jnp.float32)
    weight, bias = init_mlp_params(k2, in_features, out_features)
    out = jax.block_until_ready(mlp_layer(x, weight, bias))
    ref = x @ weight + bias
    assert out.shape == (batch, out_features)
    assert jnp.allclose(out, ref, atol=1e-5, rtol=1e-5)

    # Test 2: non-divisible M + explicit small tiles -> 3-D reduction grid,
    # in-place f32 output accumulation, zero-pad + slice path.
    M2, Kf, N2 = 10, 256, 256
    x2 = jax.random.normal(k3, (M2, Kf), jnp.float32)
    w2, b2 = init_mlp_params(k4, Kf, N2)
    out2 = jax.block_until_ready(mlp_layer(x2, w2, b2, tm=8, tn=128, tk=128))
    ref2 = x2 @ w2 + b2
    assert out2.shape == (M2, N2)
    assert jnp.allclose(out2, ref2, atol=2e-2, rtol=2e-2)

    # Test 3: bf16 operands / bf16 output -> f32 scratch-accumulator path.
    x3 = x2.astype(jnp.bfloat16)
    w3 = w2.astype(jnp.bfloat16)
    b3 = b2.astype(jnp.bfloat16)
    out3 = jax.block_until_ready(mlp_layer(x3, w3, b3, tm=16, tn=128, tk=128))
    ref3 = (x3.astype(jnp.float32) @ w3.astype(jnp.float32)
            + b3.astype(jnp.float32))
    assert out3.shape == (M2, N2)
    assert jnp.allclose(out3.astype(jnp.float32), ref3, atol=3e-2, rtol=3e-2)

    # Test 4: f32 inputs with in-kernel bf16 operand cast (single HBM pass).
    out4 = jax.block_until_ready(
        mlp_layer(x2, w2, b2, cast_operands_to_bf16=True))
    ref4 = (x2.astype(jnp.bfloat16).astype(jnp.float32)
            @ w2.astype(jnp.bfloat16).astype(jnp.float32) + b2)
    assert out4.shape == (M2, N2)
    assert jnp.allclose(out4, ref4, atol=3e-2, rtol=3e-2)

    print("KERNEL_OK")
</pallas_src>

<mosaic_0001>
module attributes {stable_mosaic.version = 11 : i64} {
  func.func @kernel(%arg0: i32, %arg1: i32, %arg2: memref<8x128xf32, #tpu.memory_space<vmem>>, %arg3: memref<128x128xf32, #tpu.memory_space<vmem>>, %arg4: memref<1x128xf32, #tpu.memory_space<vmem>>, %arg5: memref<8x128xf32, #tpu.memory_space<vmem>>) attributes {dimension_semantics = [#tpu.dimension_semantics<parallel>, #tpu.dimension_semantics<parallel>], iteration_bounds = array<i64: 1, 1>, scalar_prefetch = 0 : i64, scratch_operands = 0 : i64, tpu.core_type = #tpu.core_type<tc>, window_params = [{transform_indices = @transform_0, window_bounds = array<i64: 8, 128>}, {transform_indices = @transform_1, window_bounds = array<i64: 128, 128>}, {transform_indices = @transform_2, window_bounds = array<i64: 1, 128>}, {transform_indices = @transform_3, window_bounds = array<i64: 8, 128>}]} {
    %c0 = arith.constant 0 : index
    %c0_0 = arith.constant 0 : index
    %0 = vector.load %arg2[%c0, %c0_0] : memref<8x128xf32, #tpu.memory_space<vmem>>, vector<8x128xf32>
    %c0_1 = arith.constant 0 : index
    %c0_2 = arith.constant 0 : index
    %1 = vector.load %arg3[%c0_1, %c0_2] : memref<128x128xf32, #tpu.memory_space<vmem>>, vector<128x128xf32>
    %cst = arith.constant dense<0.000000e+00> : vector<8x128xf32>
    %2 = tpu.matmul %0, %1, %cst {dimension_numbers = #tpu.dot_dimension_numbers<[1], [0], [0], [1], [0, 0, 1, 1], [], []>} : vector<8x128xf32>, vector<128x128xf32>, vector<8x128xf32> -> vector<8x128xf32>
    %c0_3 = arith.constant 0 : index
    %c0_4 = arith.constant 0 : index
    %3 = vector.load %arg4[%c0_3, %c0_4] : memref<1x128xf32, #tpu.memory_space<vmem>>, vector<1x128xf32>
    %4 = vector.broadcast %3 : vector<1x128xf32> to vector<8x128xf32>
    %5 = arith.addf %2, %4 : vector<8x128xf32>
    %c0_5 = arith.constant 0 : index
    %c0_6 = arith.constant 0 : index
    %6 = vector.load %arg5[%c0_5, %c0_6] : memref<8x128xf32, #tpu.memory_space<vmem>>, vector<8x128xf32>
    tpu.vector_store %arg5[%c0_5, %c0_6], %5 {strides = array<i32>} : memref<8x128xf32, #tpu.memory_space<vmem>>, vector<8x128xf32>,
    return
  }
  func.func @transform_0(%arg0: i32, %arg1: i32) -> (i32, i32) {
    %c0_i32 = arith.constant 0 : i32
    %c0_i32_0 = arith.constant 0 : i32
    return %arg1, %c0_i32 : i32, i32
  }
  func.func @transform_1(%arg0: i32, %arg1: i32) -> (i32, i32) {
    %c0_i32 = arith.constant 0 : i32
    %c0_i32_0 = arith.constant 0 : i32
    return %c0_i32, %arg0 : i32, i32
  }
  func.func @transform_2(%arg0: i32, %arg1: i32) -> (i32, i32) {
    %c0_i32 = arith.constant 0 : i32
    %c0_i32_0 = arith.constant 0 : i32
    return %c0_i32, %arg0 : i32, i32
  }
  func.func @transform_3(%arg0: i32, %arg1: i32) -> (i32, i32) {
    %c0_i32 = arith.constant 0 : i32
    return %arg1, %arg0 : i32, i32
  }
}

</mosaic_0001>

<llo_original>
// kernel: tpu_custom_call.1
$region0: #{tpu_custom_call.1}
  #allocation0 [shape = 'u32[]', space=smem, size = 0x4, offset = 0x4, fixed_abs, tag = 'smem constant byte address 0x4 - core index']
  #allocation1 [shape = 'u32[144,128]{1,0:T(1,128)}', space=vmem, size = 0x12000, scoped, tag = 'internal scratch']
  %s0 = inlined_call_operand.hbm [shape: f32[8,128], index: 0, kind: input, shape index: {}]
  %s1 = inlined_call_operand.hbm [shape: f32[128,128], index: 1, kind: input, shape index: {}]
  %s2 = inlined_call_operand.vmem [shape: f32[1,128], index: 2, kind: input, shape index: {}]
  %s3 = inlined_call_operand.hbm [shape: f32[8,128], index: 3, kind: output, shape index: {}]
  %s4 = sld [smem:[#allocation0]]
  $region30: #{tpu_custom_call.1} parent=0
    _
  %s6 = ssub.s32 1, %s4
  %s7 = scalar_select 0, %s6, %s4
  $region1: #{tpu_custom_call.1} parent=0
    #allocation2 [shape = 'u8[4096]{0}', space=vmem, size = 0x1000, scoped, tag = 'input window, operand 0, single buffered']
    #allocation3 [shape = 's32[1]{0}', space=sflag, size = 0x4, scoped, tag = 'scoped memory for tpu_custom_call.1']
    #allocation4 [shape = 's32[1]{0}', space=sflag, size = 0x4, scoped, tag = 'scoped memory for tpu_custom_call.1']
    #allocation5 [shape = 'u8[65536]{0}', space=vmem, size = 0x10000, scoped, tag = 'input window, operand 1, single buffered']
    #allocation6 [shape = 's32[1]{0}', space=sflag, size = 0x4, scoped, tag = 'scoped memory for tpu_custom_call.1']
    #allocation7 [shape = 'u8[4096]{0}', space=vmem, size = 0x1000, scoped, tag = 'output window, operand 0, single buffered']
    %8 = vsyncpa [#allocation3], 0
    %9 = vsyncpa [#allocation6], 0
    %10 = vsyncpa [#allocation4], 0
    // Predicated region
    $region2: #{tpu_custom_call.1} parent=1 // pred_check
      _
    $region3: #{tpu_custom_call.1} parent=1 // pred_check_branch
      %12 = sbr.rel (0) target = $region5
    $region4: #{tpu_custom_call.1} parent=1 // pred_region
      %s14 = ssub.s32 128, 128
      %15 = vsyncadd [#allocation3], %s14
      %s17 = sshll.u32 [#allocation2], 4
      %s18 = int_to_ptr.vmem [resolvable:$true] %s17
      %20 = dma.hbm_to_vmem [thread:$0]  %s0, 128, %s18, [#allocation3]
    $region5: #{tpu_custom_call.1} parent=1 // pred_fallthru
      _
    // Predicated region
    $region6: #{tpu_custom_call.1} parent=1 // pred_check
      _
    $region7: #{tpu_custom_call.1} parent=1 // pred_check_branch
      %22 = sbr.rel (0) target = $region9
    $region8: #{tpu_custom_call.1} parent=1 // pred_region
      %s24 = ssub.s32 2048, 2048
      %25 = vsyncadd [#allocation6], %s24
      %s26 = sshll.u32 [#allocation5], 4
      %s27 = int_to_ptr.vmem [resolvable:$true] %s26
      %32 = dma.hbm_to_vmem [thread:$0]  %s1, 2048, %s27, [#allocation6], 128, 128, 8
    $region9: #{tpu_custom_call.1} parent=1 // pred_fallthru
      _
    // Predicated region
    $region10: #{tpu_custom_call.1} parent=1 // pred_check
      _
    $region11: #{tpu_custom_call.1} parent=1 // pred_check_branch
      %34 = sbr.rel (0) target = $region13
    $region12: #{tpu_custom_call.1} parent=1 // pred_region
      _
    $region13: #{tpu_custom_call.1} parent=1 // pred_fallthru
      _
    // Predicated region
    $region14: #{tpu_custom_call.1} parent=1 // pred_check
      _
    $region15: #{tpu_custom_call.1} parent=1 // pred_check_branch
      %36 = sbr.rel (0) target = $region17
    $region16: #{tpu_custom_call.1} parent=1 // pred_region
      %37 = dma.done [#allocation3], 128
    $region17: #{tpu_custom_call.1} parent=1 // pred_fallthru
      _
    // Predicated region
    $region18: #{tpu_custom_call.1} parent=1 // pred_check
      _
    $region19: #{tpu_custom_call.1} parent=1 // pred_check_branch
      %39 = sbr.rel (0) target = $region21
    $region20: #{tpu_custom_call.1} parent=1 // pred_region
      %40 = dma.done [#allocation6], 2048
    $region21: #{tpu_custom_call.1} parent=1 // pred_fallthru
      _
    %v41 = vld [vmem:[#allocation2] sm:$0xff]
    %v42 = vld [vmem:[#allocation5] sm:$0xff]
    %v43 = vld [vmem:[#allocation5 + $0x8] sm:$0xff]
    %v44 = vld [vmem:[#allocation5 + $0x10] sm:$0xff]
    %v45 = vld [vmem:[#allocation5 + $0x18] sm:$0xff]
    %v46 = vld [vmem:[#allocation5 + $0x20] sm:$0xff]
    %v47 = vld [vmem:[#allocation5 + $0x28] sm:$0xff]
    %v48 = vld [vmem:[#allocation5 + $0x30] sm:$0xff]
    %v49 = vld [vmem:[#allocation5 + $0x38] sm:$0xff]
    %v50 = vld [vmem:[#allocation5 + $0x40] sm:$0xff]
    %v51 = vld [vmem:[#allocation5 + $0x48] sm:$0xff]
    %v52 = vld [vmem:[#allocation5 + $0x50] sm:$0xff]
    %v53 = vld [vmem:[#allocation5 + $0x58] sm:$0xff]
    %v54 = vld [vmem:[#allocation5 + $0x60] sm:$0xff]
    %v55 = vld [vmem:[#allocation5 + $0x68] sm:$0xff]
    %v56 = vld [vmem:[#allocation5 + $0x70] sm:$0xff]
    %v57 = vld [vmem:[#allocation5 + $0x78] sm:$0xff]
    %v58 = vld [vmem:[%s2] sm:$0x1]
    %v60 = vlaneseq
    %v61 = vshrl.u32 %v60, 7
    %v62 = vsub.s32 0, %v61
    %v63 = vrot.slane %v58, %v62
    %65 = vmatprep.subr.mxu0 0.0
    %66 = vmatpush1.msra.mxu0 %v57
    %67 = vmatprep.subr.mxu0 0.0
    %68 = vmatpush1.msra.mxu0 %v56
    %69 = vmatprep.subr.mxu0 0.0
    %70 = vmatpush1.msra.mxu0 %v55
    %71 = vmatprep.subr.mxu0 0.0
    %72 = vmatpush1.msra.mxu0 %v54
    %73 = vmatprep.subr.mxu0 0.0
    %74 = vmatpush1.msra.mxu0 %v53
    %75 = vmatprep.subr.mxu0 0.0
    %76 = vmatpush1.msra.mxu0 %v52
    %77 = vmatprep.subr.mxu0 0.0
    %78 = vmatpush1.msra.mxu0 %v51
    %79 = vmatprep.subr.mxu0 0.0
    %80 = vmatpush1.msra.mxu0 %v50
    %81 = vmatprep.subr.mxu0 0.0
    %82 = vmatpush1.msra.mxu0 %v49
    %83 = vmatprep.subr.mxu0 0.0
    %84 = vmatpush1.msra.mxu0 %v48
    %85 = vmatprep.subr.mxu0 0.0
    %86 = vmatpush1.msra.mxu0 %v47
    %87 = vmatprep.subr.mxu0 0.0
    %88 = vmatpush1.msra.mxu0 %v46
    %89 = vmatprep.subr.mxu0 0.0
    %90 = vmatpush1.msra.mxu0 %v45
    %91 = vmatprep.subr.mxu0 0.0
    %92 = vmatpush1.msra.mxu0 %v44
    %93 = vmatprep.subr.mxu0 0.0
    %94 = vmatpush1.msra.mxu0 %v43
    %95 = vmatprep.subr.mxu0 0.0
    %96 = vmatpush1.msra.mxu0 %v42
    %97 = vmatprep.subr.mxu0 0.0
    %98 = vmatpush2.msra.mxu0 0.0
    %99 = vmatprep.subr.mxu0 0.0
    %100 = vmatpush2.msra.mxu0 0.0
    %101 = vmatprep.subr.mxu0 0.0
    %102 = vmatpush2.msra.mxu0 0.0
    %103 = vmatprep.subr.mxu0 0.0
    %104 = vmatpush2.msra.mxu0 0.0
    %105 = vmatprep.subr.mxu0 0.0
    %106 = vmatpush2.msra.mxu0 0.0
    %107 = vmatprep.subr.mxu0 0.0
    %108 = vmatpush2.msra.mxu0 0.0
    %109 = vmatprep.subr.mxu0 0.0
    %110 = vmatpush2.msra.mxu0 0.0
    %111 = vmatprep.subr.mxu0 0.0
    %112 = vmatpush2.msra.mxu0 0.0
    %113 = vmatprep.subr.mxu0 0.0
    %114 = vmatpush2.msra.mxu0 0.0
    %115 = vmatprep.subr.mxu0 0.0
    %116 = vmatpush2.msra.mxu0 0.0
    %117 = vmatprep.subr.mxu0 0.0
    %118 = vmatpush2.msra.mxu0 0.0
    %119 = vmatprep.subr.mxu0 0.0
    %120 = vmatpush2.msra.mxu0 0.0
    %121 = vmatprep.subr.mxu0 0.0
    %122 = vmatpush2.msra.mxu0 0.0
    %123 = vmatprep.subr.mxu0 0.0
    %124 = vmatpush2.msra.mxu0 0.0
    %125 = vmatprep.subr.mxu0 0.0
    %126 = vmatpush2.msra.mxu0 0.0
    %127 = vmatprep.subr.mxu0 0.0
    %128 = vmatpush2.msra.mxu0 0.0
    %129 = vmatprep.mubr.f32.mxu0 0.0
    %130 = vmatmul.mubr.f32.gmra.mxu0 %v41
    %v131 = vpop.f32.mrf.mxu0
    %v132 = vadd.f32 %v63, %v131
    %v133 = vpop.f32.mrf.mxu0
    %134 = vdwg.mxu0
    %135 = vst [vmem:[#allocation7] sm:$0xff] %v132
    // Predicated region
    $region22: #{tpu_custom_call.1} parent=1 // pred_check
      _
    $region23: #{tpu_custom_call.1} parent=1 // pred_check_branch
      %137 = sbr.rel (0) target = $region25
    $region24: #{tpu_custom_call.1} parent=1 // pred_region
      %s139 = ssub.s32 128, 128
      %140 = vsyncadd [#allocation4], %s139
      %s142 = sshll.u32 [#allocation7], 4
      %s143 = int_to_ptr.vmem [resolvable:$true] %s142
      %145 = dma.vmem_to_hbm [thread:$0]  %s143, 128, %s3, [#allocation4]
    $region25: #{tpu_custom_call.1} parent=1 // pred_fallthru
      _
    // Predicated region
    $region26: #{tpu_custom_call.1} parent=1 // pred_check
      _
    $region27: #{tpu_custom_call.1} parent=1 // pred_check_branch
      %147 = sbr.rel (0) target = $region29
    $region28: #{tpu_custom_call.1} parent=1 // pred_region
      %148 = dma.done [#allocation4], 128
    $region29: #{tpu_custom_call.1} parent=1 // pred_fallthru
      _
    %149 = vsyncpa [#allocation3], 1
    %150 = vsyncpa [#allocation6], 1
    %151 = vsyncpa [#allocation4], 1

</llo_original>
